<compile_context>
chip_gen: v7x
topology: tpu7x:2x2x1
jax: 0.10.0
libtpu: 0.0.40
codegen_flags: <defaults>
</compile_context>

<pallas_src>
import functools

import jax
import jax.numpy as jnp
from jax.experimental import pallas as pl
from jax.experimental.pallas import tpu as pltpu

HIDDEN = 64            # self.hidden_space in the PyTorch module
_MIN_SPLIT_ROWS = 1024 # only force a 2-step grid when each half-tile is still big


def _round_up(x, m):
    return (x + m - 1) // m * m


def qnet_kernel(state_ref, rnn_ref,
                w1_ref, b1_ref,
                w2_ref, b2_ref,
                wh_ref, bh_ref,
                w3_ref, b3_ref,
                q_ref, *, action_dim):
    w_dtype = w2_ref.dtype

    # Cast inputs to the weight dtype so every dot uses matching (bf16-capable)
    # operands; accumulation stays f32 via preferred_element_type.
    state = state_ref[...].astype(w_dtype)      # (TILE_B, state_dim)
    rnn = rnn_ref[...].astype(w_dtype)          # (TILE_B, rnn_hidden)

    # x = relu(Linear1(state))
    x = jnp.dot(state, w1_ref[...], preferred_element_type=jnp.float32) + b1_ref[...]
    x = jnp.maximum(x, 0.0).astype(w_dtype)

    # x = relu(Linear2(x))
    x = jnp.dot(x, w2_ref[...], preferred_element_type=jnp.float32) + b2_ref[...]
    x = jnp.maximum(x, 0.0).astype(w_dtype)

    # Single fused head matmul over the concatenated LHS (K = HIDDEN + rnn_hidden):
    #   head[:, :action_dim] = x @ Wa  + rnn @ 0   + ba      (advantage A)
    #   head[:, action_dim:] = x @ Wvx + rnn @ Wvr + bv      (V-branch pre-activation)
    xr = jnp.concatenate([x, rnn], axis=1)      # (TILE_B, HIDDEN + rnn_hidden)
    head = jnp.dot(xr, wh_ref[...], preferred_element_type=jnp.float32) + bh_ref[...]

    a = head[:, :action_dim]                    # A lives at lane offset 0

    # V = Linear3(relu(V_pre)) as a VPU/XLU reduction: w3_full is zero over the
    # A lanes, so the relu applied there is masked out and no lane slice at
    # offset action_dim is needed.
    vh = jnp.maximum(head, 0.0)
    v = jnp.sum(vh * w3_ref[...], axis=-1, keepdims=True) + b3_ref[...]

    # Q = V + (A - mean(A, dim=1, keepdim=True))
    a_mean = jnp.mean(a, axis=1, keepdims=True)
    q_ref[...] = (v + (a - a_mean)).astype(q_ref.dtype)


def _select_tile_b(B, row_align, tile_b):
    b_pad_full = _round_up(max(B, 1), row_align)
    tile_b = _round_up(max(tile_b, row_align), row_align)
    tile_b = min(tile_b, b_pad_full)
    # v7x: guarantee >= 2 grid steps when the batch is large enough so the
    # "parallel" axis can shard across both TensorCores (no-op on v5e/v6e).
    if b_pad_full >= 2 * _MIN_SPLIT_ROWS and b_pad_full // tile_b < 2:
        tile_b = _round_up((b_pad_full + 1) // 2, row_align)
    return tile_b


def qnet_forward(state, rnn_state, kparams, *, tile_b=4096):
    """Run the dueling-DQN forward.  kparams come from prepare_kernel_params."""
    B, state_dim = state.shape
    rnn_hidden = rnn_state.shape[1]
    n_head = kparams["wh"].shape[1]            # action_dim + HIDDEN
    action_dim = n_head - HIDDEN

    # Ship inputs in the parameter dtype (bf16 params -> bf16 inputs -> all
    # dots run as bf16 MXU passes and input HBM traffic halves).
    in_dtype = kparams["w1"].dtype
    if state.dtype != in_dtype:
        state = state.astype(in_dtype)
    if rnn_state.dtype != in_dtype:
        rnn_state = rnn_state.astype(in_dtype)

    itemsize = jnp.dtype(in_dtype).itemsize
    row_align = 8 * max(1, 4 // itemsize)      # 8 for f32, 16 for bf16, 32 for int8

    tile_b = _select_tile_b(B, row_align, tile_b)
    b_pad = _round_up(B, tile_b)
    if b_pad != B:
        pad = b_pad - B
        state = jnp.pad(state, ((0, pad), (0, 0)))
        rnn_state = jnp.pad(rnn_state, ((0, pad), (0, 0)))

    grid = (b_pad // tile_b,)

    def rows(i):   # batch-tiled operands
        return (i, 0)

    def fixed(i):  # weights/biases: constant block index -> stay resident in VMEM
        return (0, 0)

    in_specs = [
        pl.BlockSpec((tile_b, state_dim), rows),
        pl.BlockSpec((tile_b, rnn_hidden), rows),
        pl.BlockSpec((state_dim, HIDDEN), fixed),
        pl.BlockSpec((1, HIDDEN), fixed),
        pl.BlockSpec((HIDDEN, HIDDEN), fixed),
        pl.BlockSpec((1, HIDDEN), fixed),
        pl.BlockSpec((HIDDEN + rnn_hidden, n_head), fixed),
        pl.BlockSpec((1, n_head), fixed),
        pl.BlockSpec((1, n_head), fixed),
        pl.BlockSpec((1, 1), fixed),
    ]
    out_specs = pl.BlockSpec((tile_b, action_dim), rows)

    # Advisory cost estimate so XLA can schedule around this kernel.
    flops = 2 * b_pad * (state_dim * HIDDEN + HIDDEN * HIDDEN
                         + (HIDDEN + rnn_hidden) * n_head + n_head)
    weight_bytes = sum(int(v.size) * v.dtype.itemsize for v in kparams.values())
    bytes_accessed = (int(state.size) * itemsize
                      + int(rnn_state.size) * itemsize
                      + b_pad * action_dim * 4
                      + weight_bytes)

    # VMEM guardrail: only raise the scoped limit for very large tiles, and
    # stay under v7x's 64 MiB physical VMEM.
    vmem_est = (2 * tile_b * (state_dim + rnn_hidden) * itemsize   # double-buffered inputs
                + 2 * tile_b * action_dim * 4                      # double-buffered output
                + weight_bytes
                + tile_b * (2 * HIDDEN + 2 * n_head + 2) * 4)      # f32 intermediates
    vmem_limit = None
    if vmem_est > 24 * 1024 * 1024:
        vmem_limit = min(int(vmem_est * 2), 48 * 1024 * 1024)

    q = pl.pallas_call(
        functools.partial(qnet_kernel, action_dim=action_dim),
        grid=grid,
        in_specs=in_specs,
        out_specs=out_specs,
        out_shape=jax.ShapeDtypeStruct((b_pad, action_dim), jnp.float32),
        compiler_params=pltpu.CompilerParams(
            dimension_semantics=("parallel",),
            vmem_limit_bytes=vmem_limit),
        cost_estimate=pl.CostEstimate(flops=flops, transcendentals=0,
                                      bytes_accessed=bytes_accessed),
    )(state, rnn_state,
      kparams["w1"], kparams["b1"],
      kparams["w2"], kparams["b2"],
      kparams["wh"], kparams["bh"],
      kparams["w3_full"], kparams["b3"])

    return q[:B]


def _linear_init(key, fan_in, fan_out):
    """Deterministic PyTorch-style Linear init; weight stored as (in, out)."""
    kw, kb = jax.random.split(key)
    bound = 1.0 / jnp.sqrt(jnp.float32(fan_in))
    w = jax.random.uniform(kw, (fan_in, fan_out), jnp.float32, -bound, bound)
    b = jax.random.uniform(kb, (1, fan_out), jnp.float32, -bound, bound)
    return w, b


def make_params(key, state_dim, rnn_hidden_dim, action_dim):
    """Raw parameters in the PyTorch layout (weights pre-transposed to (in, out))."""
    k1, k2, kv, k3, ka = jax.random.split(key, 5)
    w1, b1 = _linear_init(k1, state_dim, HIDDEN)
    w2, b2 = _linear_init(k2, HIDDEN, HIDDEN)
    wv, bv = _linear_init(kv, HIDDEN + rnn_hidden_dim, HIDDEN)
    w3, b3 = _linear_init(k3, HIDDEN, 1)
    wa, ba = _linear_init(ka, HIDDEN, action_dim)
    return dict(w1=w1, b1=b1, w2=w2, b2=b2, wv=wv, bv=bv,
                w3=w3, b3=b3, wa=wa, ba=ba)


def prepare_kernel_params(p, rnn_hidden_dim, dtype=jnp.float32):
    """Build the fused-head kernel parameters.

    Head columns are ordered [A | V_pre]; head rows are ordered [x | rnn].
    Use dtype=jnp.bfloat16 on v6e/v7x (accumulation stays f32 in the kernel);
    the bf16 path needs a looser tolerance than the f32 demo check below.
    """
    action_dim = p["wa"].shape[1]
    wvx = p["wv"][:HIDDEN, :]                  # (HIDDEN, HIDDEN)
    wvr = p["wv"][HIDDEN:, :]                  # (rnn_hidden, HIDDEN)
    top = jnp.concatenate([p["wa"], wvx], axis=1)                   # (HIDDEN, A+HIDDEN)
    bot = jnp.concatenate(
        [jnp.zeros((rnn_hidden_dim, action_dim), p["wv"].dtype), wvr], axis=1)
    wh = jnp.concatenate([top, bot], axis=0)                        # (HIDDEN+rnn, A+HIDDEN)
    bh = jnp.concatenate([p["ba"], p["bv"]], axis=1)                # (1, A+HIDDEN)
    w3_full = jnp.concatenate(
        [jnp.zeros((1, action_dim), p["w3"].dtype), p["w3"].T], axis=1)  # (1, A+HIDDEN)
    kp = dict(w1=p["w1"], b1=p["b1"], w2=p["w2"], b2=p["b2"],
              wh=wh, bh=bh, w3_full=w3_full, b3=p["b3"])
    return {k: v.astype(dtype) for k, v in kp.items()}


def qnet_reference(state, rnn_state, p):
    """Pure-JAX reference matching the PyTorch forward (unfused params)."""
    x = jax.nn.relu(state @ p["w1"] + p["b1"])
    x = jax.nn.relu(x @ p["w2"] + p["b2"])
    x_v = jnp.concatenate([x, rnn_state], axis=1)
    v = jax.nn.relu(x_v @ p["wv"] + p["bv"])
    v = v @ p["w3"] + p["b3"]
    a = x @ p["wa"] + p["ba"]
    return v + (a - jnp.mean(a, axis=1, keepdims=True))


if __name__ == "__main__":
    # Small shapes consistent with the module's forward().
    batch = 40
    state_dim = 8
    rnn_hidden_dim = 32
    action_dim = 4

    key = jax.random.PRNGKey(0)
    kp, ks, kr = jax.random.split(key, 3)

    raw_params = make_params(kp, state_dim, rnn_hidden_dim, action_dim)
    kparams = prepare_kernel_params(raw_params, rnn_hidden_dim)  # f32 demo

    state = jax.random.normal(ks, (batch, state_dim), jnp.float32)
    rnn_state = jax.random.normal(kr, (batch, rnn_hidden_dim), jnp.float32)

    # Small tile so the demo exercises the multi-step, padded batch grid
    # (production use: leave tile_b at its large default).
    q = qnet_forward(state, rnn_state, kparams, tile_b=16)
    q = jax.block_until_ready(q)

    q_ref = qnet_reference(state, rnn_state, raw_params)
    assert q.shape == (batch, action_dim)
    assert jnp.allclose(q, q_ref, atol=1e-5, rtol=1e-5), "mismatch vs reference"

    print("KERNEL_OK")
</pallas_src>

<mosaic_0001>
module attributes {stable_mosaic.version = 11 : i64} {
  func.func @qnet_kernel(%arg0: i32, %arg1: memref<16x8xf32, #tpu.memory_space<vmem>>, %arg2: memref<16x32xf32, #tpu.memory_space<vmem>>, %arg3: memref<8x64xf32, #tpu.memory_space<vmem>>, %arg4: memref<1x64xf32, #tpu.memory_space<vmem>>, %arg5: memref<64x64xf32, #tpu.memory_space<vmem>>, %arg6: memref<1x64xf32, #tpu.memory_space<vmem>>, %arg7: memref<96x68xf32, #tpu.memory_space<vmem>>, %arg8: memref<1x68xf32, #tpu.memory_space<vmem>>, %arg9: memref<1x68xf32, #tpu.memory_space<vmem>>, %arg10: memref<1x1xf32, #tpu.memory_space<vmem>>, %arg11: memref<16x4xf32, #tpu.memory_space<vmem>>) attributes {dimension_semantics = [#tpu.dimension_semantics<parallel>], iteration_bounds = array<i64: 3>, scalar_prefetch = 0 : i64, scratch_operands = 0 : i64, tpu.core_type = #tpu.core_type<tc>, window_params = [{transform_indices = @transform_0, window_bounds = array<i64: 16, 8>}, {transform_indices = @transform_1, window_bounds = array<i64: 16, 32>}, {pipeline_mode = #tpu.pipeline_mode<synchronous>, transform_indices = @transform_2, window_bounds = array<i64: 8, 64>}, {pipeline_mode = #tpu.pipeline_mode<synchronous>, transform_indices = @transform_3, window_bounds = array<i64: 1, 64>}, {pipeline_mode = #tpu.pipeline_mode<synchronous>, transform_indices = @transform_4, window_bounds = array<i64: 64, 64>}, {pipeline_mode = #tpu.pipeline_mode<synchronous>, transform_indices = @transform_5, window_bounds = array<i64: 1, 64>}, {pipeline_mode = #tpu.pipeline_mode<synchronous>, transform_indices = @transform_6, window_bounds = array<i64: 96, 68>}, {pipeline_mode = #tpu.pipeline_mode<synchronous>, transform_indices = @transform_7, window_bounds = array<i64: 1, 68>}, {pipeline_mode = #tpu.pipeline_mode<synchronous>, transform_indices = @transform_8, window_bounds = array<i64: 1, 68>}, {pipeline_mode = #tpu.pipeline_mode<synchronous>, transform_indices = @transform_9, window_bounds = array<i64: 1, 1>}, {transform_indices = @transform_10, window_bounds = array<i64: 16, 4>}]} {
    %c0 = arith.constant 0 : index
    %c0_0 = arith.constant 0 : index
    %0 = vector.load %arg1[%c0, %c0_0] : memref<16x8xf32, #tpu.memory_space<vmem>>, vector<16x8xf32>
    %c0_1 = arith.constant 0 : index
    %c0_2 = arith.constant 0 : index
    %1 = vector.load %arg2[%c0_1, %c0_2] : memref<16x32xf32, #tpu.memory_space<vmem>>, vector<16x32xf32>
    %c0_3 = arith.constant 0 : index
    %c0_4 = arith.constant 0 : index
    %2 = vector.load %arg3[%c0_3, %c0_4] : memref<8x64xf32, #tpu.memory_space<vmem>>, vector<8x64xf32>
    %cst = arith.constant dense<0.000000e+00> : vector<16x64xf32>
    %3 = tpu.matmul %0, %2, %cst {dimension_numbers = #tpu.dot_dimension_numbers<[1], [0], [0], [1], [0, 0, 1, 1], [], []>} : vector<16x8xf32>, vector<8x64xf32>, vector<16x64xf32> -> vector<16x64xf32>
    %c0_5 = arith.constant 0 : index
    %c0_6 = arith.constant 0 : index
    %4 = vector.load %arg4[%c0_5, %c0_6] : memref<1x64xf32, #tpu.memory_space<vmem>>, vector<1x64xf32>
    %5 = vector.broadcast %4 : vector<1x64xf32> to vector<16x64xf32>
    %6 = arith.addf %3, %5 : vector<16x64xf32>
    %cst_7 = arith.constant 0.000000e+00 : f32
    %7 = vector.broadcast %cst_7 : f32 to vector<16x64xf32>
    %8 = arith.maximumf %6, %7 : vector<16x64xf32>
    %c0_8 = arith.constant 0 : index
    %c0_9 = arith.constant 0 : index
    %9 = vector.load %arg5[%c0_8, %c0_9] : memref<64x64xf32, #tpu.memory_space<vmem>>, vector<64x64xf32>
    %cst_10 = arith.constant dense<0.000000e+00> : vector<16x64xf32>
    %10 = tpu.matmul %8, %9, %cst_10 {dimension_numbers = #tpu.dot_dimension_numbers<[1], [0], [0], [1], [0, 0, 1, 1], [], []>} : vector<16x64xf32>, vector<64x64xf32>, vector<16x64xf32> -> vector<16x64xf32>
    %c0_11 = arith.constant 0 : index
    %c0_12 = arith.constant 0 : index
    %11 = vector.load %arg6[%c0_11, %c0_12] : memref<1x64xf32, #tpu.memory_space<vmem>>, vector<1x64xf32>
    %12 = vector.broadcast %11 : vector<1x64xf32> to vector<16x64xf32>
    %13 = arith.addf %10, %12 : vector<16x64xf32>
    %cst_13 = arith.constant 0.000000e+00 : f32
    %14 = vector.broadcast %cst_13 : f32 to vector<16x64xf32>
    %15 = arith.maximumf %13, %14 : vector<16x64xf32>
    %16 = tpu.concatenate %15, %1 in 1 : vector<16x64xf32>, vector<16x32xf32> -> vector<16x96xf32>
    %c0_14 = arith.constant 0 : index
    %c0_15 = arith.constant 0 : index
    %17 = vector.load %arg7[%c0_14, %c0_15] : memref<96x68xf32, #tpu.memory_space<vmem>>, vector<96x68xf32>
    %cst_16 = arith.constant dense<0.000000e+00> : vector<16x68xf32>
    %18 = tpu.matmul %16, %17, %cst_16 {dimension_numbers = #tpu.dot_dimension_numbers<[1], [0], [0], [1], [0, 0, 1, 1], [], []>} : vector<16x96xf32>, vector<96x68xf32>, vector<16x68xf32> -> vector<16x68xf32>
    %c0_17 = arith.constant 0 : index
    %c0_18 = arith.constant 0 : index
    %19 = vector.load %arg8[%c0_17, %c0_18] : memref<1x68xf32, #tpu.memory_space<vmem>>, vector<1x68xf32>
    %20 = vector.broadcast %19 : vector<1x68xf32> to vector<16x68xf32>
    %21 = arith.addf %18, %20 : vector<16x68xf32>
    %22 = vector.extract_strided_slice %21 {offsets = [0, 0], sizes = [16, 4], strides = [1, 1]} : vector<16x68xf32> to vector<16x4xf32>
    %cst_19 = arith.constant 0.000000e+00 : f32
    %23 = vector.broadcast %cst_19 : f32 to vector<16x68xf32>
    %24 = arith.maximumf %21, %23 : vector<16x68xf32>
    %c0_20 = arith.constant 0 : index
    %c0_21 = arith.constant 0 : index
    %25 = vector.load %arg9[%c0_20, %c0_21] : memref<1x68xf32, #tpu.memory_space<vmem>>, vector<1x68xf32>
    %26 = vector.broadcast %25 : vector<1x68xf32> to vector<16x68xf32>
    %27 = arith.mulf %24, %26 : vector<16x68xf32>
    %cst_22 = arith.constant dense<0.000000e+00> : vector<16xf32>
    %28 = vector.multi_reduction <add>, %27, %cst_22 [1] : vector<16x68xf32> to vector<16xf32>
    %29 = vector.shape_cast %28 : vector<16xf32> to vector<16x1xf32>
    %c0_23 = arith.constant 0 : index
    %c0_24 = arith.constant 0 : index
    %30 = vector.load %arg10[%c0_23, %c0_24] : memref<1x1xf32, #tpu.memory_space<vmem>>, vector<1x1xf32>
    %31 = vector.broadcast %30 : vector<1x1xf32> to vector<16x1xf32>
    %32 = arith.addf %29, %31 : vector<16x1xf32>
    %cst_25 = arith.constant dense<0.000000e+00> : vector<16xf32>
    %33 = vector.multi_reduction <add>, %22, %cst_25 [1] : vector<16x4xf32> to vector<16xf32>
    %34 = vector.shape_cast %33 : vector<16xf32> to vector<16x1xf32>
    %cst_26 = arith.constant 4.000000e+00 : f32
    %35 = vector.broadcast %cst_26 : f32 to vector<16x1xf32>
    %36 = arith.divf %34, %35 : vector<16x1xf32>
    %37 = vector.broadcast %36 : vector<16x1xf32> to vector<16x4xf32>
    %38 = arith.subf %22, %37 : vector<16x4xf32>
    %39 = vector.broadcast %32 : vector<16x1xf32> to vector<16x4xf32>
    %40 = arith.addf %39, %38 : vector<16x4xf32>
    %c0_27 = arith.constant 0 : index
    %c0_28 = arith.constant 0 : index
    %41 = vector.load %arg11[%c0_27, %c0_28] : memref<16x4xf32, #tpu.memory_space<vmem>>, vector<16x4xf32>
    tpu.vector_store %arg11[%c0_27, %c0_28], %40 {strides = array<i32>} : memref<16x4xf32, #tpu.memory_space<vmem>>, vector<16x4xf32>,
    return
  }
  func.func @transform_0(%arg0: i32) -> (i32, i32) {
    %c0_i32 = arith.constant 0 : i32
    %c0_i32_0 = arith.constant 0 : i32
    return %arg0, %c0_i32 : i32, i32
  }
  func.func @transform_1(%arg0: i32) -> (i32, i32) {
    %c0_i32 = arith.constant 0 : i32
    %c0_i32_0 = arith.constant 0 : i32
    return %arg0, %c0_i32 : i32, i32
  }
  func.func @transform_2(%arg0: i32) -> (i32, i32) {
    %c0_i32 = arith.constant 0 : i32
    %c0_i32_0 = arith.constant 0 : i32
    %c0_i32_1 = arith.constant 0 : i32
    return %c0_i32, %c0_i32_0 : i32, i32
  }
  func.func @transform_3(%arg0: i32) -> (i32, i32) {
    %c0_i32 = arith.constant 0 : i32
    %c0_i32_0 = arith.constant 0 : i32
    %c0_i32_1 = arith.constant 0 : i32
    return %c0_i32, %c0_i32_0 : i32, i32
  }
  func.func @transform_4(%arg0: i32) -> (i32, i32) {
    %c0_i32 = arith.constant 0 : i32
    %c0_i32_0 = arith.constant 0 : i32
    %c0_i32_1 = arith.constant 0 : i32
    return %c0_i32, %c0_i32_0 : i32, i32
  }
  func.func @transform_5(%arg0: i32) -> (i32, i32) {
    %c0_i32 = arith.constant 0 : i32
    %c0_i32_0 = arith.constant 0 : i32
    %c0_i32_1 = arith.constant 0 : i32
    return %c0_i32, %c0_i32_0 : i32, i32
  }
  func.func @transform_6(%arg0: i32) -> (i32, i32) {
    %c0_i32 = arith.constant 0 : i32
    %c0_i32_0 = arith.constant 0 : i32
    %c0_i32_1 = arith.constant 0 : i32
    return %c0_i32, %c0_i32_0 : i32, i32
  }
  func.func @transform_7(%arg0: i32) -> (i32, i32) {
    %c0_i32 = arith.constant 0 : i32
    %c0_i32_0 = arith.constant 0 : i32
    %c0_i32_1 = arith.constant 0 : i32
    return %c0_i32, %c0_i32_0 : i32, i32
  }
  func.func @transform_8(%arg0: i32) -> (i32, i32) {
    %c0_i32 = arith.constant 0 : i32
    %c0_i32_0 = arith.constant 0 : i32
    %c0_i32_1 = arith.constant 0 : i32
    return %c0_i32, %c0_i32_0 : i32, i32
  }
  func.func @transform_9(%arg0: i32) -> (i32, i32) {
    %c0_i32 = arith.constant 0 : i32
    %c0_i32_0 = arith.constant 0 : i32
    %c0_i32_1 = arith.constant 0 : i32
    return %c0_i32, %c0_i32_0 : i32, i32
  }
  func.func @transform_10(%arg0: i32) -> (i32, i32) {
    %c0_i32 = arith.constant 0 : i32
    %c0_i32_0 = arith.constant 0 : i32
    return %arg0, %c0_i32 : i32, i32
  }
}

</mosaic_0001>

<llo_original>
// kernel: tpu_custom_call.1
$region0: #{tpu_custom_call.1}
  #allocation0 [shape = 'u32[]', space=smem, size = 0x4, offset = 0x4, fixed_abs, tag = 'smem constant byte address 0x4 - core index']
  #allocation1 [shape = 'u32[144,128]{1,0:T(1,128)}', space=vmem, size = 0x12000, scoped, tag = 'internal scratch']
  #allocation2 [shape = 'f32[1,1]{1,0:T(1,128)S(1)}', space=vmem, size = 0x200, scoped, tag = 'scoped memory for tpu_custom_call.1']
  %s0 = inlined_call_operand.vmem [shape: f32[48,8], index: 0, kind: input, shape index: {}]
  %s1 = inlined_call_operand.vmem [shape: f32[48,32], index: 1, kind: input, shape index: {}]
  %s2 = inlined_call_operand.vmem [shape: f32[8,64], index: 2, kind: input, shape index: {}]
  %s3 = inlined_call_operand.vmem [shape: f32[1,64], index: 3, kind: input, shape index: {}]
  %s4 = inlined_call_operand.vmem [shape: f32[64,64], index: 4, kind: input, shape index: {}]
  %s5 = inlined_call_operand.vmem [shape: f32[1,64], index: 5, kind: input, shape index: {}]
  %s6 = inlined_call_operand.vmem [shape: f32[96,68], index: 6, kind: input, shape index: {}]
  %s7 = inlined_call_operand.vmem [shape: f32[1,68], index: 7, kind: input, shape index: {}]
  %s8 = inlined_call_operand.vmem [shape: f32[1,68], index: 8, kind: input, shape index: {}]
  %s9 = inlined_call_operand.<no memory space> [shape: f32[1,1], index: 9, kind: input, shape index: {}]
  %s10 = inlined_call_operand.vmem [shape: f32[48,4], index: 10, kind: output, shape index: {}]
  %s11 = sld [smem:[#allocation0]]
  $region73: #{tpu_custom_call.1} parent=0
    _
  %s13 = ssub.s32 1, %s11
  %s14 = scalar_select 0, %s13, %s11
  %v15 = vstv %s9
  %16 = vst [vmem:[#allocation2] sm:$0x1] %v15
  loop: start=0, step=1, limit=5
  $region2: #{tpu_custom_call.1} parent=0 // loop_pre_header
    _
  $region3: #{tpu_custom_call.1} parent=0 // loop_header
    %s18 = sphi 0, %s22
    %p19 = scmp.ge.s32.totalorder %s18, 5
    %s28 = sphi 0, %s30
    %s31 = sphi 0, %s28
    %s32 = sphi 0, %s31
    %s48 = sphi 0, %s32
    %s54 = sphi 0, %s56
    %s57 = sphi 0, %s54
    %s58 = sphi 0, %s57
    %s74 = sphi 0, %s58
    %s78 = sphi 0, %s78
    %s80 = sphi 0, %s78
    %s81 = sphi 0, %s80
    %s95 = sphi 0, %s81
    %s99 = sphi 0, %s99
    %s101 = sphi 0, %s99
    %s102 = sphi 0, %s101
    %s116 = sphi 0, %s102
    %s120 = sphi 0, %s120
    %s122 = sphi 0, %s120
    %s123 = sphi 0, %s122
    %s137 = sphi 0, %s123
    %s141 = sphi 0, %s141
    %s143 = sphi 0, %s141
    %s144 = sphi 0, %s143
    %s158 = sphi 0, %s144
    %s162 = sphi 0, %s162
    %s164 = sphi 0, %s162
    %s165 = sphi 0, %s164
    %s179 = sphi 0, %s165
    %s183 = sphi 0, %s183
    %s185 = sphi 0, %s183
    %s186 = sphi 0, %s185
    %s200 = sphi 0, %s186
    %s204 = sphi 0, %s204
    %s206 = sphi 0, %s204
    %s207 = sphi 0, %s206
    %s221 = sphi 0, %s207
    %s225 = sphi 0, %s225
    %s227 = sphi 0, %s225
    %s228 = sphi 0, %s227
    %s242 = sphi 0, %s228
    %s248 = sphi 0, %s250
    %s251 = sphi 0, %s248
    %s252 = sphi 0, %s251
    %s268 = sphi 0, %s252
  $region4: #{tpu_custom_call.1} parent=0 // loop_header_branch
    %21 = sbr.rel (%p19) target = $region8
  $region5: #{tpu_custom_call.1} parent=0 // loop_body
    %s23 = ssub.s32 %s18, 1
    %s24 = ssub.s32 %s18, 2
    %s25 = sadd.s32 %s18, 1
    %s26 = ssub.s32 %s18, %s25
    %p27 = scmp.eq.s32.totalorder %s26, 0
    %s29 = sadd.s32 %s28, 1
    %s30 = scalar_select %p27, %s28, %s29
    %p33 = pneg %p27
    %p34 = scmp.eq.s32.totalorder %s18, 2
    %p35 = por %p33, %p34
    %p36 = scmp.ne.s32.totalorder %s28, %s31
    %p37 = scmp.eq.s32.totalorder %s18, 0
    %p38 = por %p36, %p37
    %p39 = scmp.ne.s32.totalorder %s28, %s31
    %p40 = scmp.eq.s32.totalorder %s23, 2
    %p41 = por %p39, %p40
    %p42 = scmp.ne.s32.totalorder %s31, %s32
    %p43 = scmp.eq.s32.totalorder %s23, 0
    %p44 = por %p42, %p43
    %p45 = scmp.ne.s32.totalorder %s31, %s32
    %p46 = scmp.eq.s32.totalorder %s24, 2
    %p47 = por %p45, %p46
    %p49 = scmp.ne.s32.totalorder %s32, %s48
    %p50 = scmp.eq.s32.totalorder %s24, 0
    %p51 = por %p49, %p50
    %s52 = ssub.s32 %s18, %s25
    %p53 = scmp.eq.s32.totalorder %s52, 0
    %s55 = sadd.s32 %s54, 1
    %s56 = scalar_select %p53, %s54, %s55
    %p59 = pneg %p53
    %p60 = scmp.eq.s32.totalorder %s18, 2
    %p61 = por %p59, %p60
    %p62 = scmp.ne.s32.totalorder %s54, %s57
    %p63 = scmp.eq.s32.totalorder %s18, 0
    %p64 = por %p62, %p63
    %p65 = scmp.ne.s32.totalorder %s54, %s57
    %p66 = scmp.eq.s32.totalorder %s23, 2
    %p67 = por %p65, %p66
    %p68 = scmp.ne.s32.totalorder %s57, %s58
    %p69 = scmp.eq.s32.totalorder %s23, 0
    %p70 = por %p68, %p69
    %p71 = scmp.ne.s32.totalorder %s57, %s58
    %p72 = scmp.eq.s32.totalorder %s24, 2
    %p73 = por %p71, %p72
    %p75 = scmp.ne.s32.totalorder %s58, %s74
    %p76 = scmp.eq.s32.totalorder %s24, 0
    %p77 = por %p75, %p76
    %s79 = sadd.s32 %s78, 1
    %p82 = scmp.eq.s32.totalorder %s18, 2
    %p83 = scmp.ne.s32.totalorder %s78, %s80
    %p84 = scmp.eq.s32.totalorder %s18, 0
    %p85 = por %p83, %p84
    %p86 = scmp.ne.s32.totalorder %s78, %s80
    %p87 = scmp.eq.s32.totalorder %s23, 2
    %p88 = por %p86, %p87
    %p89 = scmp.ne.s32.totalorder %s80, %s81
    %p90 = scmp.eq.s32.totalorder %s23, 0
    %p91 = por %p89, %p90
    %p92 = scmp.ne.s32.totalorder %s80, %s81
    %p93 = scmp.eq.s32.totalorder %s24, 2
    %p94 = por %p92, %p93
    %p96 = scmp.ne.s32.totalorder %s81, %s95
    %p97 = scmp.eq.s32.totalorder %s24, 0
    %p98 = por %p96, %p97
    %s100 = sadd.s32 %s99, 1
    %p103 = scmp.eq.s32.totalorder %s18, 2
    %p104 = scmp.ne.s32.totalorder %s99, %s101
    %p105 = scmp.eq.s32.totalorder %s18, 0
    %p106 = por %p104, %p105
    %p107 = scmp.ne.s32.totalorder %s99, %s101
    %p108 = scmp.eq.s32.totalorder %s23, 2
    %p109 = por %p107, %p108
    %p110 = scmp.ne.s32.totalorder %s101, %s102
    %p111 = scmp.eq.s32.totalorder %s23, 0
    %p112 = por %p110, %p111
    %p113 = scmp.ne.s32.totalorder %s101, %s102
    %p114 = scmp.eq.s32.totalorder %s24, 2
    %p115 = por %p113, %p114
    %p117 = scmp.ne.s32.totalorder %s102, %s116
    %p118 = scmp.eq.s32.totalorder %s24, 0
    %p119 = por %p117, %p118
    %s121 = sadd.s32 %s120, 1
    %p124 = scmp.eq.s32.totalorder %s18, 2
    %p125 = scmp.ne.s32.totalorder %s120, %s122
    %p126 = scmp.eq.s32.totalorder %s18, 0
    %p127 = por %p125, %p126
    %p128 = scmp.ne.s32.totalorder %s120, %s122
    %p129 = scmp.eq.s32.totalorder %s23, 2
    %p130 = por %p128, %p129
    %p131 = scmp.ne.s32.totalorder %s122, %s123
    %p132 = scmp.eq.s32.totalorder %s23, 0
    %p133 = por %p131, %p132
    %p134 = scmp.ne.s32.totalorder %s122, %s123
    %p135 = scmp.eq.s32.totalorder %s24, 2
    %p136 = por %p134, %p135
    %p138 = scmp.ne.s32.totalorder %s123, %s137
    %p139 = scmp.eq.s32.totalorder %s24, 0
    %p140 = por %p138, %p139
    %s142 = sadd.s32 %s141, 1
    %p145 = scmp.eq.s32.totalorder %s18, 2
    %p146 = scmp.ne.s32.totalorder %s141, %s143
    %p147 = scmp.eq.s32.totalorder %s18, 0
    %p148 = por %p146, %p147
    %p149 = scmp.ne.s32.totalorder %s141, %s143
    %p150 = scmp.eq.s32.totalorder %s23, 2
    %p151 = por %p149, %p150
    %p152 = scmp.ne.s32.totalorder %s143, %s144
    %p153 = scmp.eq.s32.totalorder %s23, 0
    %p154 = por %p152, %p153
    %p155 = scmp.ne.s32.totalorder %s143, %s144
    %p156 = scmp.eq.s32.totalorder %s24, 2
    %p157 = por %p155, %p156
    %p159 = scmp.ne.s32.totalorder %s144, %s158
    %p160 = scmp.eq.s32.totalorder %s24, 0
    %p161 = por %p159, %p160
    %s163 = sadd.s32 %s162, 1
    %p166 = scmp.eq.s32.totalorder %s18, 2
    %p167 = scmp.ne.s32.totalorder %s162, %s164
    %p168 = scmp.eq.s32.totalorder %s18, 0
    %p169 = por %p167, %p168
    %p170 = scmp.ne.s32.totalorder %s162, %s164
    %p171 = scmp.eq.s32.totalorder %s23, 2
    %p172 = por %p170, %p171
    %p173 = scmp.ne.s32.totalorder %s164, %s165
    %p174 = scmp.eq.s32.totalorder %s23, 0
    %p175 = por %p173, %p174
    %p176 = scmp.ne.s32.totalorder %s164, %s165
    %p177 = scmp.eq.s32.totalorder %s24, 2
    %p178 = por %p176, %p177
    %p180 = scmp.ne.s32.totalorder %s165, %s179
    %p181 = scmp.eq.s32.totalorder %s24, 0
    %p182 = por %p180, %p181
    %s184 = sadd.s32 %s183, 1
    %p187 = scmp.eq.s32.totalorder %s18, 2
    %p188 = scmp.ne.s32.totalorder %s183, %s185
    %p189 = scmp.eq.s32.totalorder %s18, 0
    %p190 = por %p188, %p189
    %p191 = scmp.ne.s32.totalorder %s183, %s185
    %p192 = scmp.eq.s32.totalorder %s23, 2
    %p193 = por %p191, %p192
    %p194 = scmp.ne.s32.totalorder %s185, %s186
    %p195 = scmp.eq.s32.totalorder %s23, 0
    %p196 = por %p194, %p195
    %p197 = scmp.ne.s32.totalorder %s185, %s186
    %p198 = scmp.eq.s32.totalorder %s24, 2
    %p199 = por %p197, %p198
    %p201 = scmp.ne.s32.totalorder %s186, %s200
    %p202 = scmp.eq.s32.totalorder %s24, 0
    %p203 = por %p201, %p202
    %s205 = sadd.s32 %s204, 1
    %p208 = scmp.eq.s32.totalorder %s18, 2
    %p209 = scmp.ne.s32.totalorder %s204, %s206
    %p210 = scmp.eq.s32.totalorder %s18, 0
    %p211 = por %p209, %p210
    %p212 = scmp.ne.s32.totalorder %s204, %s206
    %p213 = scmp.eq.s32.totalorder %s23, 2
    %p214 = por %p212, %p213
    %p215 = scmp.ne.s32.totalorder %s206, %s207
    %p216 = scmp.eq.s32.totalorder %s23, 0
    %p217 = por %p215, %p216
    %p218 = scmp.ne.s32.totalorder %s206, %s207
    %p219 = scmp.eq.s32.totalorder %s24, 2
    %p220 = por %p218, %p219
    %p222 = scmp.ne.s32.totalorder %s207, %s221
    %p223 = scmp.eq.s32.totalorder %s24, 0
    %p224 = por %p222, %p223
    %s226 = sadd.s32 %s225, 1
    %p229 = scmp.eq.s32.totalorder %s18, 2
    %p230 = scmp.ne.s32.totalorder %s225, %s227
    %p231 = scmp.eq.s32.totalorder %s18, 0
    %p232 = por %p230, %p231
    %p233 = scmp.ne.s32.totalorder %s225, %s227
    %p234 = scmp.eq.s32.totalorder %s23, 2
    %p235 = por %p233, %p234
    %p236 = scmp.ne.s32.totalorder %s227, %s228
    %p237 = scmp.eq.s32.totalorder %s23, 0
    %p238 = por %p236, %p237
    %p239 = scmp.ne.s32.totalorder %s227, %s228
    %p240 = scmp.eq.s32.totalorder %s24, 2
    %p241 = por %p239, %p240
    %p243 = scmp.ne.s32.totalorder %s228, %s242
    %p244 = scmp.eq.s32.totalorder %s24, 0
    %p245 = por %p243, %p244
    %s246 = ssub.s32 %s18, %s25
    %p247 = scmp.eq.s32.totalorder %s246, 0
    %s249 = sadd.s32 %s248, 1
    %s250 = scalar_select %p247, %s248, %s249
    %p253 = pneg %p247
    %p254 = scmp.eq.s32.totalorder %s18, 2
    %p255 = por %p253, %p254
    %p256 = scmp.ne.s32.totalorder %s248, %s251
    %p257 = scmp.eq.s32.totalorder %s18, 0
    %p258 = por %p256, %p257
    %p259 = scmp.ne.s32.totalorder %s248, %s251
    %p260 = scmp.eq.s32.totalorder %s23, 2
    %p261 = por %p259, %p260
    %p262 = scmp.ne.s32.totalorder %s251, %s252
    %p263 = scmp.eq.s32.totalorder %s23, 0
    %p264 = por %p262, %p263
    %p265 = scmp.ne.s32.totalorder %s251, %s252
    %p266 = scmp.eq.s32.totalorder %s24, 2
    %p267 = por %p265, %p266
    %p269 = scmp.ne.s32.totalorder %s252, %s268
    %p270 = scmp.eq.s32.totalorder %s24, 0
    %p271 = por %p269, %p270
    %p272 = scmp.le.s32.totalorder 1, %s18
    %p273 = scmp.lt.s32.totalorder %s18, 4
    %p274 = pnand %p272, %p273
    %p275 = pneg %p274
    // Predicated region
    $region9: #{tpu_custom_call.1} parent=5 // pred_check
      _
    $region10: #{tpu_custom_call.1} parent=5 // pred_check_branch
      %277 = sbr.rel (%p274) target = $region12
    $region11: #{tpu_custom_call.1} parent=5 // pred_region
      %s278 = ssub.s32 %s18, 1
      // Predicated region
      $region13: #{tpu_custom_call.1} parent=11 // pred_check
        %p279 = pneg %p91
      $region14: #{tpu_custom_call.1} parent=11 // pred_check_branch
        %281 = sbr.rel (%p279) target = $region16
      $region15: #{tpu_custom_call.1} parent=11 // pred_region
        _
      $region16: #{tpu_custom_call.1} parent=11 // pred_fallthru
        _
      // Predicated region
      $region17: #{tpu_custom_call.1} parent=11 // pred_check
        %p282 = pneg %p112
      $region18: #{tpu_custom_call.1} parent=11 // pred_check_branch
        %284 = sbr.rel (%p282) target = $region20
      $region19: #{tpu_custom_call.1} parent=11 // pred_region
        _
      $region20: #{tpu_custom_call.1} parent=11 // pred_fallthru
        _
      // Predicated region
      $region21: #{tpu_custom_call.1} parent=11 // pred_check
        %p285 = pneg %p133
      $region22: #{tpu_custom_call.1} parent=11 // pred_check_branch
        %287 = sbr.rel (%p285) target = $region24
      $region23: #{tpu_custom_call.1} parent=11 // pred_region
        _
      $region24: #{tpu_custom_call.1} parent=11 // pred_fallthru
        _
      // Predicated region
      $region25: #{tpu_custom_call.1} parent=11 // pred_check
        %p288 = pneg %p154
      $region26: #{tpu_custom_call.1} parent=11 // pred_check_branch
        %290 = sbr.rel (%p288) target = $region28
      $region27: #{tpu_custom_call.1} parent=11 // pred_region
        _
      $region28: #{tpu_custom_call.1} parent=11 // pred_fallthru
        _
      // Predicated region
      $region29: #{tpu_custom_call.1} parent=11 // pred_check
        %p291 = pneg %p175
      $region30: #{tpu_custom_call.1} parent=11 // pred_check_branch
        %293 = sbr.rel (%p291) target = $region32
      $region31: #{tpu_custom_call.1} parent=11 // pred_region
        _
      $region32: #{tpu_custom_call.1} parent=11 // pred_fallthru
        _
      // Predicated region
      $region33: #{tpu_custom_call.1} parent=11 // pred_check
        %p294 = pneg %p196
      $region34: #{tpu_custom_call.1} parent=11 // pred_check_branch
        %296 = sbr.rel (%p294) target = $region36
      $region35: #{tpu_custom_call.1} parent=11 // pred_region
        _
      $region36: #{tpu_custom_call.1} parent=11 // pred_fallthru
        _
      // Predicated region
      $region37: #{tpu_custom_call.1} parent=11 // pred_check
        %p297 = pneg %p217
      $region38: #{tpu_custom_call.1} parent=11 // pred_check_branch
        %299 = sbr.rel (%p297) target = $region40
      $region39: #{tpu_custom_call.1} parent=11 // pred_region
        _
      $region40: #{tpu_custom_call.1} parent=11 // pred_fallthru
        _
      // Predicated region
      $region41: #{tpu_custom_call.1} parent=11 // pred_check
        %p300 = pneg %p238
      $region42: #{tpu_custom_call.1} parent=11 // pred_check_branch
        %302 = sbr.rel (%p300) target = $region44
      $region43: #{tpu_custom_call.1} parent=11 // pred_region
        _
      $region44: #{tpu_custom_call.1} parent=11 // pred_fallthru
        _
    $region12: #{tpu_custom_call.1} parent=5 // pred_fallthru
      _
    %p303 = scmp.lt.s32.totalorder %s18, 3
    // Predicated region
    $region45: #{tpu_custom_call.1} parent=5 // pred_check
      %p304 = pneg %p303
    $region46: #{tpu_custom_call.1} parent=5 // pred_check_branch
      %306 = sbr.rel (%p304) target = $region48
    $region47: #{tpu_custom_call.1} parent=5 // pred_region
      // Predicated region
      $region49: #{tpu_custom_call.1} parent=47 // pred_check
        %p307 = pneg %p38
      $region50: #{tpu_custom_call.1} parent=47 // pred_check_branch
        %309 = sbr.rel (%p307) target = $region52
      $region51: #{tpu_custom_call.1} parent=47 // pred_region
        %s310 = smul.u32 2, %s18
        %p311 = scmp.lt.s32.totalorder %s310, 5
        %s312 = scalar_select %p311, %s310, 5
        %s313 = smul.addr %s312, 8
        %s314 = scalar_lea.vmem %s0, %s313
        %s315 = smul.u32 2, %s18
      $region52: #{tpu_custom_call.1} parent=47 // pred_fallthru
        _
      // Predicated region
      $region53: #{tpu_custom_call.1} parent=47 // pred_check
        %p316 = pneg %p64
      $region54: #{tpu_custom_call.1} parent=47 // pred_check_branch
        %318 = sbr.rel (%p316) target = $region56
      $region55: #{tpu_custom_call.1} parent=47 // pred_region
        %s319 = smul.u32 2, %s18
        %p320 = scmp.lt.s32.totalorder %s319, 5
        %s321 = scalar_select %p320, %s319, 5
        %s322 = smul.addr %s321, 8
        %s323 = scalar_lea.vmem %s1, %s322
        %s324 = smul.u32 2, %s18
      $region56: #{tpu_custom_call.1} parent=47 // pred_fallthru
        _
    $region48: #{tpu_custom_call.1} parent=5 // pred_fallthru
      _
    %p325 = scmp.le.s32.totalorder 1, %s18
    %p326 = scmp.lt.s32.totalorder %s18, 4
    %p327 = pnand %p325, %p326
    %p328 = pneg %p327
    // Predicated region
    $region57: #{tpu_custom_call.1} parent=5 // pred_check
      _
    $region58: #{tpu_custom_call.1} parent=5 // pred_check_branch
      %330 = sbr.rel (%p327) target = $region60
    $region59: #{tpu_custom_call.1} parent=5 // pred_region
      %s331 = ssub.s32 %s18, 1
      %s332 = smul.u32 2, %s23
      %p333 = scmp.lt.s32.totalorder %s332, 5
      %s334 = scalar_select %p333, %s332, 5
      %s335 = smul.addr %s334, 8
      %s336 = scalar_lea.vmem %s0, %s335
      %p337 = pneg %p44
      %p338 = pneg %p41
      %s339 = smul.u32 2, %s23
      %p340 = scmp.lt.s32.totalorder %s339, 5
      %s341 = scalar_select %p340, %s339, 5
      %s342 = smul.addr %s341, 8
      %s343 = scalar_lea.vmem %s1, %s342
      %p344 = pneg %p70
      %p345 = pneg %p67
      %p346 = pneg %p91
      %p347 = pneg %p88
      %p348 = pneg %p112
      %p349 = pneg %p109
      %p350 = pneg %p133
      %p351 = pneg %p130
      %p352 = pneg %p154
      %p353 = pneg %p151
      %p354 = pneg %p175
      %p355 = pneg %p172
      %p356 = pneg %p196
      %p357 = pneg %p193
      %p358 = pneg %p217
      %p359 = pneg %p214
      %p360 = pneg %p238
      %p361 = pneg %p235
      %p362 = pneg %p264
      %p363 = pneg %p261
      %s364 = smul.u32 2, %s23
      %p365 = scmp.lt.s32.totalorder %s364, 5
      %s366 = scalar_select %p365, %s364, 5
      %s367 = smul.addr %s366, 8
      %s368 = scalar_lea.vmem %s10, %s367
      %s369 = smul.u32 2, %s23
      %p370 = scmp.lt.s32.totalorder %s369, 5
      %s371 = scalar_select %p370, %s369, 5
      %s372 = smul.addr %s371, 8
      %s373 = scalar_lea.vmem %s0, %s372
      %s374 = smul.u32 2, %s23
      %s375 = smul.u32 2, %s23
      %p376 = scmp.lt.s32.totalorder %s375, 5
      %s377 = scalar_select %p376, %s375, 5
      %s378 = smul.addr %s377, 8
      %s379 = scalar_lea.vmem %s1, %s378
      %s380 = smul.u32 2, %s23
      %s381 = smul.u32 2, %s23
      %p382 = scmp.lt.s32.totalorder %s381, 5
      %s383 = scalar_select %p382, %s381, 5
      %s384 = smul.addr %s383, 8
      %s385 = scalar_lea.vmem %s10, %s384
      %s386 = smul.u32 2, %s23
      %v387 = vld [vmem:[%s373] sm:$0xff]
      %v388 = vld [vmem:[%s373 + $0x8] sm:$0xff]
      %v389 = vld [vmem:[%s379] sm:$0xff]
      %v390 = vld [vmem:[%s379 + $0x8] sm:$0xff]
      %v391 = vld [vmem:[%s2] sm:$0xff]
      %v392 = vld [vmem:[%s3] sm:$0x1]
      %v394 = vlaneseq
      %v395 = vshrl.u32 %v394, 7
      %v396 = vsub.s32 0, %v395
      %v397 = vrot.slane %v392, %v396
      %vm399 = vcmask 64512
      %v401 = vsel %vm399, %v387, 0
      %v404 = vsel %vm399, %v388, 0
      %406 = vmatprep.subr.mxu0 0.0
      %407 = vmatpush1.msra.mxu0 %v391
      %408 = vmatprep.subr.mxu0 0.0
      %409 = vmatpush1.msra.mxu0 0.0
      %410 = vmatprep.subr.mxu0 0.0
      %411 = vmatpush1.msra.mxu0 0.0
      %412 = vmatprep.subr.mxu0 0.0
      %413 = vmatpush1.msra.mxu0 0.0
      %414 = vmatprep.subr.mxu0 0.0
      %415 = vmatpush1.msra.mxu0 0.0
      %416 = vmatprep.subr.mxu0 0.0
      %417 = vmatpush1.msra.mxu0 0.0
      %418 = vmatprep.subr.mxu0 0.0
      %419 = vmatpush1.msra.mxu0 0.0
      %420 = vmatprep.subr.mxu0 0.0
      %421 = vmatpush1.msra.mxu0 0.0
      %422 = vmatprep.subr.mxu0 0.0
      %423 = vmatpush1.msra.mxu0 0.0
      %424 = vmatprep.subr.mxu0 0.0
      %425 = vmatpush1.msra.mxu0 0.0
      %426 = vmatprep.subr.mxu0 0.0
      %427 = vmatpush1.msra.mxu0 0.0
      %428 = vmatprep.subr.mxu0 0.0
      %429 = vmatpush1.msra.mxu0 0.0
      %430 = vmatprep.subr.mxu0 0.0
      %431 = vmatpush1.msra.mxu0 0.0
      %432 = vmatprep.subr.mxu0 0.0
      %433 = vmatpush1.msra.mxu0 0.0
      %434 = vmatprep.subr.mxu0 0.0
      %435 = vmatpush1.msra.mxu0 0.0
      %436 = vmatprep.subr.mxu0 0.0
      %437 = vmatpush1.msra.mxu0 0.0
      %438 = vmatprep.subr.mxu0 0.0
      %439 = vmatpush1.msra.mxu0 0.0
      %440 = vmatprep.subr.mxu0 0.0
      %441 = vmatpush1.msra.mxu0 0.0
      %442 = vmatprep.subr.mxu0 0.0
      %443 = vmatpush1.msra.mxu0 0.0
      %444 = vmatprep.subr.mxu0 0.0
      %445 = vmatpush1.msra.mxu0 0.0
      %446 = vmatprep.subr.mxu0 0.0
      %447 = vmatpush1.msra.mxu0 0.0
      %448 = vmatprep.subr.mxu0 0.0
      %449 = vmatpush1.msra.mxu0 0.0
      %450 = vmatprep.subr.mxu0 0.0
      %451 = vmatpush1.msra.mxu0 0.0
      %452 = vmatprep.subr.mxu0 0.0
      %453 = vmatpush1.msra.mxu0 0.0
      %454 = vmatprep.subr.mxu0 0.0
      %455 = vmatpush1.msra.mxu0 0.0
      %456 = vmatprep.subr.mxu0 0.0
      %457 = vmatpush1.msra.mxu0 0.0
      %458 = vmatprep.subr.mxu0 0.0
      %459 = vmatpush1.msra.mxu0 0.0
      %460 = vmatprep.subr.mxu0 0.0
      %461 = vmatpush1.msra.mxu0 0.0
      %462 = vmatprep.subr.mxu0 0.0
      %463 = vmatpush1.msra.mxu0 0.0
      %464 = vmatprep.subr.mxu0 0.0
      %465 = vmatpush1.msra.mxu0 0.0
      %466 = vmatprep.subr.mxu0 0.0
      %467 = vmatpush1.msra.mxu0 0.0
      %468 = vmatprep.subr.mxu0 0.0
      %469 = vmatpush1.msra.mxu0 0.0
      %470 = vmatprep.mubr.f32.mxu0 0.0
      %471 = vmatmul.mubr.f32.gmra.mrb[0].mxu0 %v401
      %v472 = vpop.f32.mrb[0].mxu0
      %v473 = vadd.f32 %v397, %v472
      %v474 = vpop.f32.mrb[0].mxu0
      %475 = vmatprep.mubr.f32.mxu0 0.0
      %476 = vmatmul.mubr.f32.gmra.mrb[0].mxu0 %v404
      %v477 = vpop.f32.mrb[0].mxu0
      %v478 = vadd.f32 %v397, %v477
      %v479 = vpop.f32.mrb[0].mxu0
      %480 = vdwg.mxu0
      %v481 = vmax.f32 %v473, 0.0
      %v482 = vmax.f32 %v478, 0.0
      %v483 = vld [vmem:[%s4] sm:$0xff]
      %v484 = vld [vmem:[%s4 + $0x8] sm:$0xff]
      %v485 = vld [vmem:[%s4 + $0x10] sm:$0xff]
      %v486 = vld [vmem:[%s4 + $0x18] sm:$0xff]
      %v487 = vld [vmem:[%s4 + $0x20] sm:$0xff]
      %v488 = vld [vmem:[%s4 + $0x28] sm:$0xff]
      %v489 = vld [vmem:[%s4 + $0x30] sm:$0xff]
      %v490 = vld [vmem:[%s4 + $0x38] sm:$0xff]
      %v491 = vld [vmem:[%s5] sm:$0x1]
      %v493 = vlaneseq
      %v494 = vshrl.u32 %v493, 7
      %v495 = vsub.s32 0, %v494
      %v496 = vrot.slane %v491, %v495
      %vm498 = vcmask 523264
      %v500 = vsel %vm498, %v481, 0
      %v503 = vsel %vm498, %v482, 0
      %505 = vmatprep.subr.mxu0 0.0
      %506 = vmatpush1.msra.mxu0 %v483
      %507 = vmatprep.subr.mxu0 0.0
      %508 = vmatpush1.msra.mxu0 %v484
      %509 = vmatprep.subr.mxu0 0.0
      %510 = vmatpush1.msra.mxu0 %v485
      %511 = vmatprep.subr.mxu0 0.0
      %512 = vmatpush1.msra.mxu0 %v486
      %513 = vmatprep.subr.mxu0 0.0
      %514 = vmatpush1.msra.mxu0 %v487
      %515 = vmatprep.subr.mxu0 0.0
      %516 = vmatpush1.msra.mxu0 %v488
      %517 = vmatprep.subr.mxu0 0.0
      %518 = vmatpush1.msra.mxu0 %v489
      %519 = vmatprep.subr.mxu0 0.0
      %520 = vmatpush1.msra.mxu0 %v490
      %521 = vmatprep.subr.mxu0 0.0
      %522 = vmatpush1.msra.mxu0 0.0
      %523 = vmatprep.subr.mxu0 0.0
      %524 = vmatpush1.msra.mxu0 0.0
      %525 = vmatprep.subr.mxu0 0.0
      %526 = vmatpush1.msra.mxu0 0.0
      %527 = vmatprep.subr.mxu0 0.0
      %528 = vmatpush1.msra.mxu0 0.0
      %529 = vmatprep.subr.mxu0 0.0
      %530 = vmatpush1.msra.mxu0 0.0
      %531 = vmatprep.subr.mxu0 0.0
      %532 = vmatpush1.msra.mxu0 0.0
      %533 = vmatprep.subr.mxu0 0.0
      %534 = vmatpush1.msra.mxu0 0.0
      %535 = vmatprep.subr.mxu0 0.0
      %536 = vmatpush1.msra.mxu0 0.0
      %537 = vmatprep.subr.mxu0 0.0
      %538 = vmatpush1.msra.mxu0 0.0
      %539 = vmatprep.subr.mxu0 0.0
      %540 = vmatpush1.msra.mxu0 0.0
      %541 = vmatprep.subr.mxu0 0.0
      %542 = vmatpush1.msra.mxu0 0.0
      %543 = vmatprep.subr.mxu0 0.0
      %544 = vmatpush1.msra.mxu0 0.0
      %545 = vmatprep.subr.mxu0 0.0
      %546 = vmatpush1.msra.mxu0 0.0
      %547 = vmatprep.subr.mxu0 0.0
      %548 = vmatpush1.msra.mxu0 0.0
      %549 = vmatprep.subr.mxu0 0.0
      %550 = vmatpush1.msra.mxu0 0.0
      %551 = vmatprep.subr.mxu0 0.0
      %552 = vmatpush1.msra.mxu0 0.0
      %553 = vmatprep.subr.mxu0 0.0
      %554 = vmatpush1.msra.mxu0 0.0
      %555 = vmatprep.subr.mxu0 0.0
      %556 = vmatpush1.msra.mxu0 0.0
      %557 = vmatprep.subr.mxu0 0.0
      %558 = vmatpush1.msra.mxu0 0.0
      %559 = vmatprep.subr.mxu0 0.0
      %560 = vmatpush1.msra.mxu0 0.0
      %561 = vmatprep.subr.mxu0 0.0
      %562 = vmatpush1.msra.mxu0 0.0
      %563 = vmatprep.subr.mxu0 0.0
      %564 = vmatpush1.msra.mxu0 0.0
      %565 = vmatprep.subr.mxu0 0.0
      %566 = vmatpush1.msra.mxu0 0.0
      %567 = vmatprep.subr.mxu0 0.0
      %568 = vmatpush1.msra.mxu0 0.0
      %569 = vmatprep.mubr.f32.mxu0 0.0
      %570 = vmatmul.mubr.f32.gmra.mrb[0].mxu0 %v500
      %v571 = vpop.f32.mrb[0].mxu0
      %v572 = vadd.f32 %v496, %v571
      %v573 = vpop.f32.mrb[0].mxu0
      %574 = vmatprep.mubr.f32.mxu0 0.0
      %575 = vmatmul.mubr.f32.gmra.mrb[0].mxu0 %v503
      %v576 = vpop.f32.mrb[0].mxu0
      %v577 = vadd.f32 %v496, %v576
      %v578 = vpop.f32.mrb[0].mxu0
      %579 = vdwg.mxu0
      %v580 = vmax.f32 %v572, 0.0
      %v581 = vmax.f32 %v577, 0.0
      %584 = vrot.lane.b32.xlu0 %v389, 64
      %v585 = vpop.permute.xlu0 %584
      %586 = vrot.lane.b32.xlu0 %v390, 64
      %v587 = vpop.permute.xlu0 %586
      %v590 = vsel %vm498, %v580, %v585
      %v591 = vsel %vm498, %v581, %v587
      %v592 = vld [vmem:[%s6] sm:$0xff]
      %v593 = vld [vmem:[%s6 + $0x8] sm:$0xff]
      %v594 = vld [vmem:[%s6 + $0x10] sm:$0xff]
      %v595 = vld [vmem:[%s6 + $0x18] sm:$0xff]
      %v596 = vld [vmem:[%s6 + $0x20] sm:$0xff]
      %v597 = vld [vmem:[%s6 + $0x28] sm:$0xff]
      %v598 = vld [vmem:[%s6 + $0x30] sm:$0xff]
      %v599 = vld [vmem:[%s6 + $0x38] sm:$0xff]
      %v600 = vld [vmem:[%s6 + $0x40] sm:$0xff]
      %v601 = vld [vmem:[%s6 + $0x48] sm:$0xff]
      %v602 = vld [vmem:[%s6 + $0x50] sm:$0xff]
      %v603 = vld [vmem:[%s6 + $0x58] sm:$0xff]
      %v604 = vld [vmem:[%s7] sm:$0x1]
      %v606 = vlaneseq
      %v607 = vshrl.u32 %v606, 7
      %v608 = vsub.s32 0, %v607
      %v609 = vrot.slane %v604, %v608
      %vm611 = vcmask 785408
      %v613 = vsel %vm611, %v590, 0
      %v616 = vsel %vm611, %v591, 0
      %618 = vmatprep.subr.mxu0 0.0
      %619 = vmatpush1.msra.mxu0 %v592
      %620 = vmatprep.subr.mxu0 0.0
      %621 = vmatpush1.msra.mxu0 %v593
      %622 = vmatprep.subr.mxu0 0.0
      %623 = vmatpush1.msra.mxu0 %v594
      %624 = vmatprep.subr.mxu0 0.0
      %625 = vmatpush1.msra.mxu0 %v595
      %626 = vmatprep.subr.mxu0 0.0
      %627 = vmatpush1.msra.mxu0 %v596
      %628 = vmatprep.subr.mxu0 0.0
      %629 = vmatpush1.msra.mxu0 %v597
      %630 = vmatprep.subr.mxu0 0.0
      %631 = vmatpush1.msra.mxu0 %v598
      %632 = vmatprep.subr.mxu0 0.0
      %633 = vmatpush1.msra.mxu0 %v599
      %634 = vmatprep.subr.mxu0 0.0
      %635 = vmatpush1.msra.mxu0 %v600
      %636 = vmatprep.subr.mxu0 0.0
      %637 = vmatpush1.msra.mxu0 %v601
      %638 = vmatprep.subr.mxu0 0.0
      %639 = vmatpush1.msra.mxu0 %v602
      %640 = vmatprep.subr.mxu0 0.0
      %641 = vmatpush1.msra.mxu0 %v603
      %642 = vmatprep.subr.mxu0 0.0
      %643 = vmatpush1.msra.mxu0 0.0
      %644 = vmatprep.subr.mxu0 0.0
      %645 = vmatpush1.msra.mxu0 0.0
      %646 = vmatprep.subr.mxu0 0.0
      %647 = vmatpush1.msra.mxu0 0.0
      %648 = vmatprep.subr.mxu0 0.0
      %649 = vmatpush1.msra.mxu0 0.0
      %650 = vmatprep.subr.mxu0 0.0
      %651 = vmatpush1.msra.mxu0 0.0
      %652 = vmatprep.subr.mxu0 0.0
      %653 = vmatpush1.msra.mxu0 0.0
      %654 = vmatprep.subr.mxu0 0.0
      %655 = vmatpush1.msra.mxu0 0.0
      %656 = vmatprep.subr.mxu0 0.0
      %657 = vmatpush1.msra.mxu0 0.0
      %658 = vmatprep.subr.mxu0 0.0
      %659 = vmatpush1.msra.mxu0 0.0
      %660 = vmatprep.subr.mxu0 0.0
      %661 = vmatpush1.msra.mxu0 0.0
      %662 = vmatprep.subr.mxu0 0.0
      %663 = vmatpush1.msra.mxu0 0.0
      %664 = vmatprep.subr.mxu0 0.0
      %665 = vmatpush1.msra.mxu0 0.0
      %666 = vmatprep.subr.mxu0 0.0
      %667 = vmatpush1.msra.mxu0 0.0
      %668 = vmatprep.subr.mxu0 0.0
      %669 = vmatpush1.msra.mxu0 0.0
      %670 = vmatprep.subr.mxu0 0.0
      %671 = vmatpush1.msra.mxu0 0.0
      %672 = vmatprep.subr.mxu0 0.0
      %673 = vmatpush1.msra.mxu0 0.0
      %674 = vmatprep.subr.mxu0 0.0
      %675 = vmatpush1.msra.mxu0 0.0
      %676 = vmatprep.subr.mxu0 0.0
      %677 = vmatpush1.msra.mxu0 0.0
      %678 = vmatprep.subr.mxu0 0.0
      %679 = vmatpush1.msra.mxu0 0.0
      %680 = vmatprep.subr.mxu0 0.0
      %681 = vmatpush1.msra.mxu0 0.0
      %682 = vmatprep.mubr.f32.mxu0 0.0
      %683 = vmatmul.mubr.f32.gmra.mrb[0].mxu0 %v613
      %v684 = vpop.f32.mrb[0].mxu0
      %v685 = vadd.f32 %v609, %v684
      %v686 = vpop.f32.mrb[0].mxu0
      %687 = vmatprep.mubr.f32.mxu0 0.0
      %688 = vmatmul.mubr.f32.gmra.mrb[0].mxu0 %v616
      %v689 = vpop.f32.mrb[0].mxu0
      %v690 = vadd.f32 %v609, %v689
      %v691 = vpop.f32.mrb[0].mxu0
      %692 = vdwg.mxu0
      %v693 = vmax.f32 %v685, 0.0
      %v694 = vmax.f32 %v690, 0.0
      %v695 = vld [vmem:[%s8] sm:$0x1]
      %v697 = vlaneseq
      %v698 = vshrl.u32 %v697, 7
      %v699 = vsub.s32 0, %v698
      %v700 = vrot.slane %v695, %v699
      %v702 = vmul.f32 %v693, %v700
      %v703 = vmul.f32 %v694, %v700
      %vm704 = vcmask 556032
      %v705 = vsel %vm704, %v702, 0.0
      %706 = vadd.xlane.f32.xlu0 %v705
      %v707 = vpop.xlane.xlu0 %706
      %v708 = vsel %vm704, %v703, 0.0
      %709 = vadd.xlane.f32.xlu0 %v708
      %v710 = vpop.xlane.xlu0 %709
      %v711 = vld [vmem:[#allocation2] sm:$0x1]
      %v713 = vlaneseq
      %v714 = vshrl.u32 %v713, 7
      %v715 = vsub.s32 0, %v714
      %v716 = vrot.slane %v711, %v715
      %v718 = vadd.f32 %v707, %v716
      %v719 = vadd.f32 %v710, %v716
      %vm720 = vcmask 31744
      %v721 = vsel %vm720, %v685, 0.0
      %722 = vadd.xlane.f32.xlu0 %v721
      %v723 = vpop.xlane.xlu0 %722
      %v724 = vsel %vm720, %v690, 0.0
      %725 = vadd.xlane.f32.xlu0 %v724
      %v726 = vpop.xlane.xlu0 %725
      %v727 = vrcp.pop 4.0
      %v728 = vmul.f32 %v723, %v727
      %v729 = vmul.f32 %v726, %v727
      %v730 = vsub.f32 %v685, %v728
      %v731 = vsub.f32 %v690, %v729
      %733 = vset.pattern.permute.xlu0 0
      %734 = vperm.xlu0 %733, %v718
      %v735 = vpop.permute.xlu0 %734
      %738 = vset.pattern.permute.xlu0 0
      %739 = vperm.xlu0 %738, %v719
      %v740 = vpop.permute.xlu0 %739
      %v742 = vadd.f32 %v735, %v730
      %v743 = vadd.f32 %v740, %v731
      %744 = vst.msk [vmem:[%s385] sm:$0xff] %vm720, %v742
      %745 = vst.msk [vmem:[%s385 + $0x8] sm:$0xff] %vm720, %v743
      %s746 = smul.u32 2, %s23
      %p747 = scmp.lt.s32.totalorder %s746, 5
      %s748 = scalar_select %p747, %s746, 5
      %s749 = smul.addr %s748, 8
      %s750 = scalar_lea.vmem %s10, %s749
      // Predicated region
      $region61: #{tpu_custom_call.1} parent=59 // pred_check
        %p751 = pneg %p261
      $region62: #{tpu_custom_call.1} parent=59 // pred_check_branch
        %753 = sbr.rel (%p751) target = $region64
      $region63: #{tpu_custom_call.1} parent=59 // pred_region
        %s754 = smul.u32 2, %s23
      $region64: #{tpu_custom_call.1} parent=59 // pred_fallthru
        _
    $region60: #{tpu_custom_call.1} parent=5 // pred_fallthru
      _
    %p755 = scmp.le.s32.totalorder 2, %s18
    // Predicated region
    $region65: #{tpu_custom_call.1} parent=5 // pred_check
      %p756 = pneg %p755
    $region66: #{tpu_custom_call.1} parent=5 // pred_check_branch
      %758 = sbr.rel (%p756) target = $region68
    $region67: #{tpu_custom_call.1} parent=5 // pred_region
      %s759 = ssub.s32 %s18, 2
      // Predicated region
      $region69: #{tpu_custom_call.1} parent=67 // pred_check
        %p760 = pneg %p267
      $region70: #{tpu_custom_call.1} parent=67 // pred_check_branch
        %762 = sbr.rel (%p760) target = $region72
      $region71: #{tpu_custom_call.1} parent=67 // pred_region
        %s763 = smul.u32 2, %s24
        %p764 = scmp.lt.s32.totalorder %s763, 5
        %s765 = scalar_select %p764, %s763, 5
        %s766 = smul.addr %s765, 8
        %s767 = scalar_lea.vmem %s10, %s766
      $region72: #{tpu_custom_call.1} parent=67 // pred_fallthru
        _
    $region68: #{tpu_custom_call.1} parent=5 // pred_fallthru
      _
  $region6: #{tpu_custom_call.1} parent=0 // loop_footer
    %s22 = sadd.s32 1, %s18
  $region7: #{tpu_custom_call.1} parent=0 // loop_footer_branch
    %17 = sbr.rel target = $region3
  $region8: #{tpu_custom_call.1} parent=0 // loop_exit
    _

</llo_original>
